<compile_context>
chip_gen: v5e
topology: v5e:2x2
jax: 0.10.0
libtpu: 0.0.40
codegen_flags: <defaults>
</compile_context>

<pallas_src>
import functools

import jax
import jax.numpy as jnp
import numpy as np
from jax import lax
from jax.experimental import pallas as pl
from jax.experimental.pallas import tpu as pltpu

_MIB = 1024 * 1024


def _round_up(x, m):
    return ((x + m - 1) // m) * m


def _tpu_plan():
    """Return (vmem_budget_bytes, tensorcores_per_chip) for the local TPU."""
    kind = ""
    try:
        kind = jax.devices()[0].device_kind.lower()
    except Exception:
        pass
    vmem_cap = None
    try:
        vmem_cap = int(pltpu.get_tpu_info().vmem_capacity_bytes)
    except Exception:
        vmem_cap = None
    two_tc = "v7" in kind  # v7x has 2 TensorCores per chip
    if vmem_cap is None:
        vmem_cap = (64 if two_tc else 128) * _MIB
    if two_tc or vmem_cap <= 64 * _MIB:
        # v7x: only 64 MiB physical VMEM; leave headroom for double-buffering.
        return 28 * _MIB, (2 if two_tc else 1)
    if "v5" in kind:
        return 14 * _MIB, 1  # v5e
    return 48 * _MIB, 1      # v6e (128 MiB physical VMEM)


def _batch_plan(batch):
    """bf16 sublane packing is [16,128] -> pad batch to 16; tile big batches."""
    bp16 = _round_up(max(batch, 16), 16)
    b_block = min(bp16, 512)
    bp = _round_up(bp16, b_block)
    return bp, b_block


def _plan_tiles(modes, batch, k2, n2, budget, num_tc):
    """Choose (mode_block, b_block) against the double-buffered VMEM budget."""
    _, b_block = _batch_plan(batch)
    # bf16 x block + bf16 w block + two f32 output blocks, per mode row.
    bytes_per_mode = 2 * (b_block * k2 + k2 * n2) + 4 * b_block * n2
    max_block = max(1, budget // (2 * bytes_per_mode))  # 2x: pipeline buffers
    if num_tc >= 2:
        # 2 TensorCores: want an even number of equal-size mode steps.
        steps = max(2, -(-modes // max_block))
        steps += steps % 2
        mode_block = -(-modes // steps)
    else:
        # Single TC: the grid is a sequential loop; take the largest block.
        mode_block = min(modes, max_block)
    return max(1, mode_block), b_block


def _spectral_block_kernel(x_ref, w_ref, or_ref, oi_ref):
    # x_ref: (Mb, Bb, K2)   bf16 packed activations [xr | xi] for Mb modes
    # w_ref: (Mb, K2, N2)   bf16 packed block-real weights [[wr, wi], [-wi, wr]]
    # or_ref/oi_ref: (Mb, Bb, Np) f32 real / imag outputs (Np = N2 // 2, 128-aligned)
    res = lax.dot_general(
        x_ref[...],
        w_ref[...],
        dimension_numbers=(((2,), (1,)), ((0,), (0,))),
        preferred_element_type=jnp.float32,
    )
    n_half = or_ref.shape[-1]
    or_ref[...] = res[..., :n_half]        # lane-aligned split (multiple of 128)
    oi_ref[...] = res[..., n_half:]


def _spectral_matmul(x_pack, w_pack, mode_block, b_block, vmem_limit):
    """x_pack: (Mp, Bp, K2) bf16, w_pack: (Mp, K2, N2) bf16 ->
       (out_r, out_i): two (Mp, Bp, N2//2) f32 arrays."""
    mp, bp, k2 = x_pack.shape
    n2 = w_pack.shape[2]
    n_half = n2 // 2
    grid = (mp // mode_block, bp // b_block)

    flops = 2 * mp * bp * k2 * n2
    bytes_accessed = 2 * (mp * bp * k2) + 2 * (mp * k2 * n2) + 4 * (2 * mp * bp * n_half)

    return pl.pallas_call(
        _spectral_block_kernel,
        grid=grid,
        in_specs=[
            pl.BlockSpec((mode_block, b_block, k2), lambda m, b: (m, b, 0)),
            pl.BlockSpec((mode_block, k2, n2), lambda m, b: (m, 0, 0)),
        ],
        out_specs=[
            pl.BlockSpec((mode_block, b_block, n_half), lambda m, b: (m, b, 0)),
            pl.BlockSpec((mode_block, b_block, n_half), lambda m, b: (m, b, 0)),
        ],
        out_shape=[
            jax.ShapeDtypeStruct((mp, bp, n_half), jnp.float32),
            jax.ShapeDtypeStruct((mp, bp, n_half), jnp.float32),
        ],
        compiler_params=pltpu.CompilerParams(
            dimension_semantics=("parallel", "parallel"),
            vmem_limit_bytes=int(vmem_limit),
        ),
        cost_estimate=pl.CostEstimate(
            flops=int(flops), transcendentals=0, bytes_accessed=int(bytes_accessed)),
    )(x_pack, w_pack)


@functools.partial(
    jax.jit,
    static_argnames=("modes", "cin", "cout", "mode_block", "b_block", "vmem_limit"))
def _spectral_forward(x, w_pack, *, modes, cin, cout, mode_block, b_block, vmem_limit):
    B, _, size = x.shape
    mp, k2, n2 = w_pack.shape
    bp, _ = _batch_plan(B)

    # TODO(synk): rfft/irfft have no Pallas equivalent; kept as XLA ops (glue).
    x_ft = jnp.fft.rfft(x, axis=2)  # (B, Cin, size//2+1) complex64
    k = x_ft.shape[2]
    if k > modes:
        x_ft = x_ft[:, :, :modes]
    elif k < modes:
        x_ft = jnp.pad(x_ft, ((0, 0), (0, 0), (0, modes - k)))

    # Pack [real | imag] along channels, mode leading, pad to TPU-friendly dims,
    # and cast to bf16 (MXU-native); accumulation stays f32 in the kernel.
    x_pack = jnp.concatenate([jnp.real(x_ft), jnp.imag(x_ft)], axis=1)  # (B, 2Cin, M)
    x_pack = jnp.transpose(x_pack, (2, 0, 1))                           # (M, B, 2Cin)
    x_pack = jnp.pad(
        x_pack, ((0, mp - modes), (0, bp - B), (0, k2 - 2 * cin)))      # (Mp, Bp, K2)
    x_pack = x_pack.astype(jnp.bfloat16)

    out_r, out_i = _spectral_matmul(x_pack, w_pack, mode_block, b_block, vmem_limit)

    y_ft = lax.complex(out_r[:modes, :B, :cout], out_i[:modes, :B, :cout])  # (M,B,Cout)
    y_ft = jnp.transpose(y_ft, (1, 2, 0))                                   # (B,Cout,M)
    return jnp.fft.irfft(y_ft, n=size, axis=2)                              # (B,Cout,size)


class SpectralConvolutionPallas:
    """JAX/Pallas port of the PyTorch SpectralConvulution module."""

    def __init__(self, in_channels, out_channels, modes, key):
        self.in_channels = in_channels
        self.out_channels = out_channels
        self.modes = modes
        self.scale = 1.0 / (in_channels * out_channels)

        # torch.rand(..., dtype=torch.cfloat) = uniform[0,1) real + uniform[0,1) imag
        kr, ki = jax.random.split(key)
        wr = jax.random.uniform(kr, (in_channels, out_channels, modes), dtype=jnp.float32)
        wi = jax.random.uniform(ki, (in_channels, out_channels, modes), dtype=jnp.float32)
        self.weights = self.scale * lax.complex(wr, wi)  # complex64, (Cin, Cout, modes)

        # ---- Hoisted weight prep (once per layer, not per forward) ----
        # Block-real weight per mode: [[wr, wi], [-wi, wr]], each half of the
        # output dim padded to a multiple of 128 so out_r / out_i split on a
        # lane boundary.  Contraction dim (2*Cin) padded to a multiple of 128.
        self._k2 = _round_up(2 * in_channels, 128)     # packed contraction dim
        self._np = _round_up(out_channels, 128)        # per-half output dim
        self._n2 = 2 * self._np
        wr_t = jnp.transpose(jnp.real(self.weights), (2, 0, 1))  # (M, Cin, Cout)
        wi_t = jnp.transpose(jnp.imag(self.weights), (2, 0, 1))  # (M, Cin, Cout)
        padn = ((0, 0), (0, 0), (0, self._np - out_channels))
        wr_p = jnp.pad(wr_t, padn)
        wi_p = jnp.pad(wi_t, padn)
        top = jnp.concatenate([wr_p, wi_p], axis=2)               # (M, Cin, 2Np)
        bot = jnp.concatenate([-wi_p, wr_p], axis=2)              # (M, Cin, 2Np)
        w_blk = jnp.concatenate([top, bot], axis=1)               # (M, 2Cin, 2Np)
        w_blk = jnp.pad(w_blk, ((0, 0), (0, self._k2 - 2 * in_channels), (0, 0)))
        self._w_base = jnp.asarray(w_blk, jnp.bfloat16)           # (M, K2, N2) bf16
        self._w_cache = {}                                        # mp -> padded weights

        self._budget, self._num_tc = _tpu_plan()

    def __call__(self, x):
        B = x.shape[0]
        mode_block, b_block = _plan_tiles(
            self.modes, B, self._k2, self._n2, self._budget, self._num_tc)
        mp = _round_up(self.modes, mode_block)

        w_pack = self._w_cache.get(mp)
        if w_pack is None:
            # Explicit zero padding (never undefined memory) so padded modes
            # contribute exact zeros; they are sliced off in the wrapper.
            w_pack = jnp.pad(self._w_base, ((0, mp - self.modes), (0, 0), (0, 0)))
            self._w_cache[mp] = w_pack

        vmem_limit = self._budget + 16 * _MIB
        return _spectral_forward(
            x, w_pack,
            modes=self.modes, cin=self.in_channels, cout=self.out_channels,
            mode_block=mode_block, b_block=b_block, vmem_limit=vmem_limit)


def _reference_forward(x, weights, modes):
    """Pure-JAX f32 reference mirroring the PyTorch module, for validation."""
    x_ft = jnp.fft.rfft(x, axis=2)
    k = x_ft.shape[2]
    if k > modes:
        x_ft = x_ft[:, :, :modes]
    elif k < modes:
        x_ft = jnp.pad(x_ft, ((0, 0), (0, 0), (0, modes - k)))
    x_ft = jnp.einsum('bix,iox->box', x_ft, weights)
    return jnp.fft.irfft(x_ft, n=x.shape[2], axis=2)


if __name__ == "__main__":
    key = jax.random.PRNGKey(0)
    k_w, k_x = jax.random.split(key)

    batch, in_channels, out_channels, size, modes = 2, 4, 6, 16, 8

    layer = SpectralConvolutionPallas(in_channels, out_channels, modes, k_w)
    x = jax.random.normal(k_x, (batch, in_channels, size), dtype=jnp.float32)

    y = layer(x)
    y = jax.block_until_ready(y)

    y_ref = jax.block_until_ready(_reference_forward(x, layer.weights, modes))

    assert y.shape == (batch, out_channels, size), y.shape
    assert y.dtype == jnp.float32, y.dtype
    # bf16 MXU operands (f32 accumulation) -> relaxed tolerance vs the f32 reference.
    np.testing.assert_allclose(np.asarray(y), np.asarray(y_ref), rtol=2e-2, atol=2e-2)

    print("KERNEL_OK")
</pallas_src>

<mosaic_0001>
module attributes {stable_mosaic.version = 11 : i64} {
  func.func @_spectral_block_kernel(%arg0: i32, %arg1: i32, %arg2: memref<8x16x128xbf16, #tpu.memory_space<vmem>>, %arg3: memref<8x128x256xbf16, #tpu.memory_space<vmem>>, %arg4: memref<8x16x128xf32, #tpu.memory_space<vmem>>, %arg5: memref<8x16x128xf32, #tpu.memory_space<vmem>>) attributes {dimension_semantics = [#tpu.dimension_semantics<parallel>, #tpu.dimension_semantics<parallel>], iteration_bounds = array<i64: 1, 1>, scalar_prefetch = 0 : i64, scratch_operands = 0 : i64, tpu.core_type = #tpu.core_type<tc>, window_params = [{transform_indices = @transform_0, window_bounds = array<i64: 8, 16, 128>}, {transform_indices = @transform_1, window_bounds = array<i64: 8, 128, 256>}, {transform_indices = @transform_2, window_bounds = array<i64: 8, 16, 128>}, {transform_indices = @transform_3, window_bounds = array<i64: 8, 16, 128>}]} {
    %c0 = arith.constant 0 : index
    %c0_0 = arith.constant 0 : index
    %c0_1 = arith.constant 0 : index
    %0 = vector.load %arg2[%c0, %c0_0, %c0_1] : memref<8x16x128xbf16, #tpu.memory_space<vmem>>, vector<8x16x128xbf16>
    %c0_2 = arith.constant 0 : index
    %c0_3 = arith.constant 0 : index
    %c0_4 = arith.constant 0 : index
    %1 = vector.load %arg3[%c0_2, %c0_3, %c0_4] : memref<8x128x256xbf16, #tpu.memory_space<vmem>>, vector<8x128x256xbf16>
    %cst = arith.constant dense<0.000000e+00> : vector<8x16x256xf32>
    %2 = tpu.matmul %0, %1, %cst {dimension_numbers = #tpu.dot_dimension_numbers<[2], [1], [1], [2], [0, 0, 0, 1, 1, 2], [0], [0]>} : vector<8x16x128xbf16>, vector<8x128x256xbf16>, vector<8x16x256xf32> -> vector<8x16x256xf32>
    %3 = vector.extract_strided_slice %2 {offsets = [0, 0, 0], sizes = [8, 16, 128], strides = [1, 1, 1]} : vector<8x16x256xf32> to vector<8x16x128xf32>
    %c0_5 = arith.constant 0 : index
    %c0_6 = arith.constant 0 : index
    %c0_7 = arith.constant 0 : index
    %4 = vector.load %arg4[%c0_5, %c0_6, %c0_7] : memref<8x16x128xf32, #tpu.memory_space<vmem>>, vector<8x16x128xf32>
    tpu.vector_store %arg4[%c0_5, %c0_6, %c0_7], %3 {strides = array<i32>} : memref<8x16x128xf32, #tpu.memory_space<vmem>>, vector<8x16x128xf32>,
    %5 = vector.extract_strided_slice %2 {offsets = [0, 0, 128], sizes = [8, 16, 128], strides = [1, 1, 1]} : vector<8x16x256xf32> to vector<8x16x128xf32>
    %c0_8 = arith.constant 0 : index
    %c0_9 = arith.constant 0 : index
    %c0_10 = arith.constant 0 : index
    %6 = vector.load %arg5[%c0_8, %c0_9, %c0_10] : memref<8x16x128xf32, #tpu.memory_space<vmem>>, vector<8x16x128xf32>
    tpu.vector_store %arg5[%c0_8, %c0_9, %c0_10], %5 {strides = array<i32>} : memref<8x16x128xf32, #tpu.memory_space<vmem>>, vector<8x16x128xf32>,
    return
  }
  func.func @transform_0(%arg0: i32, %arg1: i32) -> (i32, i32, i32) {
    %c0_i32 = arith.constant 0 : i32
    %c0_i32_0 = arith.constant 0 : i32
    return %arg0, %arg1, %c0_i32 : i32, i32, i32
  }
  func.func @transform_1(%arg0: i32, %arg1: i32) -> (i32, i32, i32) {
    %c0_i32 = arith.constant 0 : i32
    %c0_i32_0 = arith.constant 0 : i32
    %c0_i32_1 = arith.constant 0 : i32
    return %arg0, %c0_i32, %c0_i32_0 : i32, i32, i32
  }
  func.func @transform_2(%arg0: i32, %arg1: i32) -> (i32, i32, i32) {
    %c0_i32 = arith.constant 0 : i32
    %c0_i32_0 = arith.constant 0 : i32
    return %arg0, %arg1, %c0_i32 : i32, i32, i32
  }
  func.func @transform_3(%arg0: i32, %arg1: i32) -> (i32, i32, i32) {
    %c0_i32 = arith.constant 0 : i32
    %c0_i32_0 = arith.constant 0 : i32
    return %arg0, %arg1, %c0_i32 : i32, i32, i32
  }
}

</mosaic_0001>

<llo_original>
// kernel: reverse.1
$region0: #{reverse.1}
  #allocation0 [shape = 's32[1]{0}', space=sflag, size = 0x4, scoped, tag = 'scoped memory for reverse.1']
  %s0 = inlined_call_operand.vmem [shape: f32[2,6,7], index: 0, kind: input, shape index: {}]
  %s1 = inlined_call_operand.vmem [shape: f32[2,6,7], index: 1, kind: output, shape index: {}]
  %s2 = scalar_lea.vmem %s0, 12
  %v3 = vld [vmem:[%s2] sm:$0x3]
  %4 = vst [vmem:[%s1] sm:$0x3] %v3
  %s5 = scalar_lea.vmem %s0, 10
  %v6 = vld [vmem:[%s5] sm:$0x3]
  %s7 = scalar_lea.vmem %s1, 2
  %8 = vst [vmem:[%s7] sm:$0x3] %v6
  %s9 = scalar_lea.vmem %s0, 8
  %v10 = vld [vmem:[%s9] sm:$0x3]
  %s11 = scalar_lea.vmem %s1, 4
  %12 = vst [vmem:[%s11] sm:$0x3] %v10
  %s13 = scalar_lea.vmem %s0, 6
  %v14 = vld [vmem:[%s13] sm:$0x3]
  %s15 = scalar_lea.vmem %s1, 6
  %16 = vst [vmem:[%s15] sm:$0x3] %v14
  %s17 = scalar_lea.vmem %s0, 4
  %v18 = vld [vmem:[%s17] sm:$0x3]
  %s19 = scalar_lea.vmem %s1, 8
  %20 = vst [vmem:[%s19] sm:$0x3] %v18
  %s21 = scalar_lea.vmem %s0, 2
  %v22 = vld [vmem:[%s21] sm:$0x3]
  %s23 = scalar_lea.vmem %s1, 10
  %24 = vst [vmem:[%s23] sm:$0x3] %v22
  %v25 = vld [vmem:[%s0] sm:$0x3]
  %s26 = scalar_lea.vmem %s1, 12
  %27 = vst [vmem:[%s26] sm:$0x3] %v25

// kernel: _spectral_forward.1
$region0: #{_spectral_forward.1}
  #allocation0 [shape = 'u32[]', space=smem, size = 0x4, offset = 0x4, fixed_abs, tag = 'smem constant byte address 0x4 - core index']
  #allocation1 [shape = 'u32[72,128]{1,0:T(1,128)}', space=vmem, size = 0x9000, scoped, tag = 'internal scratch']
  %s0 = inlined_call_operand.vmem [shape: bf16[8,16,128], index: 0, kind: input, shape index: {}]
  %s1 = inlined_call_operand.hbm [shape: bf16[8,128,256], index: 1, kind: input, shape index: {}]
  %s2 = inlined_call_operand.vmem [shape: f32[8,16,128], index: 2, kind: output, shape index: {0}]
  %s3 = inlined_call_operand.vmem [shape: f32[8,16,128], index: 3, kind: output, shape index: {1}]
  %4 = xla_tuple %s2, %s3
  %s5 = sld [smem:[#allocation0]]
  $region30: #{_spectral_forward.1} parent=0
    _
  %s7 = ssub.s32 1, %s5
  %s8 = scalar_select 0, %s7, %s5
  $region1: #{_spectral_forward.1} parent=0
    #allocation2 [shape = 'u8[524288]{0}', space=vmem, size = 0x80000, scoped, tag = 'input window, operand 1, single buffered']
    #allocation3 [shape = 's32[1]{0}', space=sflag, size = 0x4, scoped, tag = 'scoped memory for _spectral_forward.1']
    %9 = vsyncpa [#allocation3], 0
    // Predicated region
    $region2: #{_spectral_forward.1} parent=1 // pred_check
      _
    $region3: #{_spectral_forward.1} parent=1 // pred_check_branch
      %11 = sbr.rel (0) target = $region5
    $region4: #{_spectral_forward.1} parent=1 // pred_region
      _
    $region5: #{_spectral_forward.1} parent=1 // pred_fallthru
      _
    // Predicated region
    $region6: #{_spectral_forward.1} parent=1 // pred_check
      _
    $region7: #{_spectral_forward.1} parent=1 // pred_check_branch
      %13 = sbr.rel (0) target = $region9
    $region8: #{_spectral_forward.1} parent=1 // pred_region
      %15 = vsyncadd [#allocation3], 0
      %s16 = sshll.u32 %s1, 4
      %s17 = int_to_ptr.hbm [resolvable:$true] %s16
      %s18 = sshll.u32 [#allocation2], 4
      %s19 = int_to_ptr.vmem [resolvable:$true] %s18
      %24 = dma.hbm_to_vmem [thread:$0]  %s17, 16384, %s19, [#allocation3], 128, 128, 8
    $region9: #{_spectral_forward.1} parent=1 // pred_fallthru
      _
    // Predicated region
    $region10: #{_spectral_forward.1} parent=1 // pred_check
      _
    $region11: #{_spectral_forward.1} parent=1 // pred_check_branch
      %26 = sbr.rel (0) target = $region13
    $region12: #{_spectral_forward.1} parent=1 // pred_region
      %28 = dma.done [#allocation3], 16384
    $region13: #{_spectral_forward.1} parent=1 // pred_fallthru
      _
    %v29 = vld [vmem:[%s0] sm:$0xf]
    %v30 = vld [vmem:[%s0 + $0x4] sm:$0xf]
    %v31 = vld [vmem:[%s0 + $0x8] sm:$0xf]
    %v32 = vld [vmem:[%s0 + $0xc] sm:$0xf]
    %v33 = vld [vmem:[%s0 + $0x10] sm:$0xf]
    %v34 = vld [vmem:[%s0 + $0x14] sm:$0xf]
    %v35 = vld [vmem:[%s0 + $0x18] sm:$0xf]
    %v36 = vld [vmem:[%s0 + $0x1c] sm:$0xf]
    %v37 = vld [vmem:[%s0 + $0x20] sm:$0xf]
    %v38 = vld [vmem:[%s0 + $0x24] sm:$0xf]
    %v39 = vld [vmem:[%s0 + $0x28] sm:$0xf]
    %v40 = vld [vmem:[%s0 + $0x2c] sm:$0xf]
    %v41 = vld [vmem:[%s0 + $0x30] sm:$0xf]
    %v42 = vld [vmem:[%s0 + $0x34] sm:$0xf]
    %v43 = vld [vmem:[%s0 + $0x38] sm:$0xf]
    %v44 = vld [vmem:[%s0 + $0x3c] sm:$0xf]
    %v45 = vld [vmem:[#allocation2] sm:$0xff]
    %v46 = vld [vmem:[#allocation2 + $0x8] sm:$0xff]
    %v47 = vld [vmem:[#allocation2 + $0x10] sm:$0xff]
    %v48 = vld [vmem:[#allocation2 + $0x18] sm:$0xff]
    %v49 = vld [vmem:[#allocation2 + $0x20] sm:$0xff]
    %v50 = vld [vmem:[#allocation2 + $0x28] sm:$0xff]
    %v51 = vld [vmem:[#allocation2 + $0x30] sm:$0xff]
    %v52 = vld [vmem:[#allocation2 + $0x38] sm:$0xff]
    %v53 = vld [vmem:[#allocation2 + $0x40] sm:$0xff]
    %v54 = vld [vmem:[#allocation2 + $0x48] sm:$0xff]
    %v55 = vld [vmem:[#allocation2 + $0x50] sm:$0xff]
    %v56 = vld [vmem:[#allocation2 + $0x58] sm:$0xff]
    %v57 = vld [vmem:[#allocation2 + $0x60] sm:$0xff]
    %v58 = vld [vmem:[#allocation2 + $0x68] sm:$0xff]
    %v59 = vld [vmem:[#allocation2 + $0x70] sm:$0xff]
    %v60 = vld [vmem:[#allocation2 + $0x78] sm:$0xff]
    %v61 = vld [vmem:[#allocation2 + $0x80] sm:$0xff]
    %v62 = vld [vmem:[#allocation2 + $0x88] sm:$0xff]
    %v63 = vld [vmem:[#allocation2 + $0x90] sm:$0xff]
    %v64 = vld [vmem:[#allocation2 + $0x98] sm:$0xff]
    %v65 = vld [vmem:[#allocation2 + $0xa0] sm:$0xff]
    %v66 = vld [vmem:[#allocation2 + $0xa8] sm:$0xff]
    %v67 = vld [vmem:[#allocation2 + $0xb0] sm:$0xff]
    %v68 = vld [vmem:[#allocation2 + $0xb8] sm:$0xff]
    %v69 = vld [vmem:[#allocation2 + $0xc0] sm:$0xff]
    %v70 = vld [vmem:[#allocation2 + $0xc8] sm:$0xff]
    %v71 = vld [vmem:[#allocation2 + $0xd0] sm:$0xff]
    %v72 = vld [vmem:[#allocation2 + $0xd8] sm:$0xff]
    %v73 = vld [vmem:[#allocation2 + $0xe0] sm:$0xff]
    %v74 = vld [vmem:[#allocation2 + $0xe8] sm:$0xff]
    %v75 = vld [vmem:[#allocation2 + $0xf0] sm:$0xff]
    %v76 = vld [vmem:[#allocation2 + $0xf8] sm:$0xff]
    %v77 = vld [vmem:[#allocation2 + $0x100] sm:$0xff]
    %v78 = vld [vmem:[#allocation2 + $0x108] sm:$0xff]
    %v79 = vld [vmem:[#allocation2 + $0x110] sm:$0xff]
    %v80 = vld [vmem:[#allocation2 + $0x118] sm:$0xff]
    %v81 = vld [vmem:[#allocation2 + $0x120] sm:$0xff]
    %v82 = vld [vmem:[#allocation2 + $0x128] sm:$0xff]
    %v83 = vld [vmem:[#allocation2 + $0x130] sm:$0xff]
    %v84 = vld [vmem:[#allocation2 + $0x138] sm:$0xff]
    %v85 = vld [vmem:[#allocation2 + $0x140] sm:$0xff]
    %v86 = vld [vmem:[#allocation2 + $0x148] sm:$0xff]
    %v87 = vld [vmem:[#allocation2 + $0x150] sm:$0xff]
    %v88 = vld [vmem:[#allocation2 + $0x158] sm:$0xff]
    %v89 = vld [vmem:[#allocation2 + $0x160] sm:$0xff]
    %v90 = vld [vmem:[#allocation2 + $0x168] sm:$0xff]
    %v91 = vld [vmem:[#allocation2 + $0x170] sm:$0xff]
    %v92 = vld [vmem:[#allocation2 + $0x178] sm:$0xff]
    %v93 = vld [vmem:[#allocation2 + $0x180] sm:$0xff]
    %v94 = vld [vmem:[#allocation2 + $0x188] sm:$0xff]
    %v95 = vld [vmem:[#allocation2 + $0x190] sm:$0xff]
    %v96 = vld [vmem:[#allocation2 + $0x198] sm:$0xff]
    %v97 = vld [vmem:[#allocation2 + $0x1a0] sm:$0xff]
    %v98 = vld [vmem:[#allocation2 + $0x1a8] sm:$0xff]
    %v99 = vld [vmem:[#allocation2 + $0x1b0] sm:$0xff]
    %v100 = vld [vmem:[#allocation2 + $0x1b8] sm:$0xff]
    %v101 = vld [vmem:[#allocation2 + $0x1c0] sm:$0xff]
    %v102 = vld [vmem:[#allocation2 + $0x1c8] sm:$0xff]
    %v103 = vld [vmem:[#allocation2 + $0x1d0] sm:$0xff]
    %v104 = vld [vmem:[#allocation2 + $0x1d8] sm:$0xff]
    %v105 = vld [vmem:[#allocation2 + $0x1e0] sm:$0xff]
    %v106 = vld [vmem:[#allocation2 + $0x1e8] sm:$0xff]
    %v107 = vld [vmem:[#allocation2 + $0x1f0] sm:$0xff]
    %v108 = vld [vmem:[#allocation2 + $0x1f8] sm:$0xff]
    %v109 = vld [vmem:[#allocation2 + $0x200] sm:$0xff]
    %v110 = vld [vmem:[#allocation2 + $0x208] sm:$0xff]
    %v111 = vld [vmem:[#allocation2 + $0x210] sm:$0xff]
    %v112 = vld [vmem:[#allocation2 + $0x218] sm:$0xff]
    %v113 = vld [vmem:[#allocation2 + $0x220] sm:$0xff]
    %v114 = vld [vmem:[#allocation2 + $0x228] sm:$0xff]
    %v115 = vld [vmem:[#allocation2 + $0x230] sm:$0xff]
    %v116 = vld [vmem:[#allocation2 + $0x238] sm:$0xff]
    %v117 = vld [vmem:[#allocation2 + $0x240] sm:$0xff]
    %v118 = vld [vmem:[#allocation2 + $0x248] sm:$0xff]
    %v119 = vld [vmem:[#allocation2 + $0x250] sm:$0xff]
    %v120 = vld [vmem:[#allocation2 + $0x258] sm:$0xff]
    %v121 = vld [vmem:[#allocation2 + $0x260] sm:$0xff]
    %v122 = vld [vmem:[#allocation2 + $0x268] sm:$0xff]
    %v123 = vld [vmem:[#allocation2 + $0x270] sm:$0xff]
    %v124 = vld [vmem:[#allocation2 + $0x278] sm:$0xff]
    %v125 = vld [vmem:[#allocation2 + $0x280] sm:$0xff]
    %v126 = vld [vmem:[#allocation2 + $0x288] sm:$0xff]
    %v127 = vld [vmem:[#allocation2 + $0x290] sm:$0xff]
    %v128 = vld [vmem:[#allocation2 + $0x298] sm:$0xff]
    %v129 = vld [vmem:[#allocation2 + $0x2a0] sm:$0xff]
    %v130 = vld [vmem:[#allocation2 + $0x2a8] sm:$0xff]
    %v131 = vld [vmem:[#allocation2 + $0x2b0] sm:$0xff]
    %v132 = vld [vmem:[#allocation2 + $0x2b8] sm:$0xff]
    %v133 = vld [vmem:[#allocation2 + $0x2c0] sm:$0xff]
    %v134 = vld [vmem:[#allocation2 + $0x2c8] sm:$0xff]
    %v135 = vld [vmem:[#allocation2 + $0x2d0] sm:$0xff]
    %v136 = vld [vmem:[#allocation2 + $0x2d8] sm:$0xff]
    %v137 = vld [vmem:[#allocation2 + $0x2e0] sm:$0xff]
    %v138 = vld [vmem:[#allocation2 + $0x2e8] sm:$0xff]
    %v139 = vld [vmem:[#allocation2 + $0x2f0] sm:$0xff]
    %v140 = vld [vmem:[#allocation2 + $0x2f8] sm:$0xff]
    %v141 = vld [vmem:[#allocation2 + $0x300] sm:$0xff]
    %v142 = vld [vmem:[#allocation2 + $0x308] sm:$0xff]
    %v143 = vld [vmem:[#allocation2 + $0x310] sm:$0xff]
    %v144 = vld [vmem:[#allocation2 + $0x318] sm:$0xff]
    %v145 = vld [vmem:[#allocation2 + $0x320] sm:$0xff]
    %v146 = vld [vmem:[#allocation2 + $0x328] sm:$0xff]
    %v147 = vld [vmem:[#allocation2 + $0x330] sm:$0xff]
    %v148 = vld [vmem:[#allocation2 + $0x338] sm:$0xff]
    %v149 = vld [vmem:[#allocation2 + $0x340] sm:$0xff]
    %v150 = vld [vmem:[#allocation2 + $0x348] sm:$0xff]
    %v151 = vld [vmem:[#allocation2 + $0x350] sm:$0xff]
    %v152 = vld [vmem:[#allocation2 + $0x358] sm:$0xff]
    %v153 = vld [vmem:[#allocation2 + $0x360] sm:$0xff]
    %v154 = vld [vmem:[#allocation2 + $0x368] sm:$0xff]
    %v155 = vld [vmem:[#allocation2 + $0x370] sm:$0xff]
    %v156 = vld [vmem:[#allocation2 + $0x378] sm:$0xff]
    %v157 = vld [vmem:[#allocation2 + $0x380] sm:$0xff]
    %v158 = vld [vmem:[#allocation2 + $0x388] sm:$0xff]
    %v159 = vld [vmem:[#allocation2 + $0x390] sm:$0xff]
    %v160 = vld [vmem:[#allocation2 + $0x398] sm:$0xff]
    %v161 = vld [vmem:[#allocation2 + $0x3a0] sm:$0xff]
    %v162 = vld [vmem:[#allocation2 + $0x3a8] sm:$0xff]
    %v163 = vld [vmem:[#allocation2 + $0x3b0] sm:$0xff]
    %v164 = vld [vmem:[#allocation2 + $0x3b8] sm:$0xff]
    %v165 = vld [vmem:[#allocation2 + $0x3c0] sm:$0xff]
    %v166 = vld [vmem:[#allocation2 + $0x3c8] sm:$0xff]
    %v167 = vld [vmem:[#allocation2 + $0x3d0] sm:$0xff]
    %v168 = vld [vmem:[#allocation2 + $0x3d8] sm:$0xff]
    %v169 = vld [vmem:[#allocation2 + $0x3e0] sm:$0xff]
    %v170 = vld [vmem:[#allocation2 + $0x3e8] sm:$0xff]
    %v171 = vld [vmem:[#allocation2 + $0x3f0] sm:$0xff]
    %v172 = vld [vmem:[#allocation2 + $0x3f8] sm:$0xff]
    %v175 = vunpack.c.l.b16 %v29
    %v176 = vunpack.c.l.b16 %v30
    %v177 = vpack.c.b16 %v176, %v175
    %v195 = vunpack.c.l.b16 %v45
    %v196 = vunpack.c.h.b16 %v45
    %v197 = vunpack.c.l.b16 %v46
    %v198 = vunpack.c.h.b16 %v46
    %v199 = vunpack.c.l.b16 %v47
    %v200 = vunpack.c.h.b16 %v47
    %v201 = vunpack.c.l.b16 %v48
    %v202 = vunpack.c.h.b16 %v48
    %v203 = vunpack.c.l.b16 %v49
    %v204 = vunpack.c.h.b16 %v49
    %v205 = vunpack.c.l.b16 %v50
    %v206 = vunpack.c.h.b16 %v50
    %v207 = vunpack.c.l.b16 %v51
    %v208 = vunpack.c.h.b16 %v51
    %v209 = vunpack.c.l.b16 %v52
    %v210 = vunpack.c.h.b16 %v52
    %v211 = vunpack.c.l.b16 %v53
    %v212 = vunpack.c.h.b16 %v53
    %v213 = vunpack.c.l.b16 %v54
    %v214 = vunpack.c.h.b16 %v54
    %v215 = vunpack.c.l.b16 %v55
    %v216 = vunpack.c.h.b16 %v55
    %v217 = vunpack.c.l.b16 %v56
    %v218 = vunpack.c.h.b16 %v56
    %v219 = vunpack.c.l.b16 %v57
    %v220 = vunpack.c.h.b16 %v57
    %v221 = vunpack.c.l.b16 %v58
    %v222 = vunpack.c.h.b16 %v58
    %v223 = vunpack.c.l.b16 %v59
    %v224 = vunpack.c.h.b16 %v59
    %v225 = vunpack.c.l.b16 %v60
    %v226 = vunpack.c.h.b16 %v60
    %v227 = vpack.c.b16 %v197, %v195
    %v228 = vpack.c.b16 %v198, %v196
    %v229 = vpack.c.b16 %v201, %v199
    %v230 = vpack.c.b16 %v202, %v200
    %v231 = vpack.c.b16 %v205, %v203
    %v232 = vpack.c.b16 %v206, %v204
    %v233 = vpack.c.b16 %v209, %v207
    %v234 = vpack.c.b16 %v210, %v208
    %v235 = vpack.c.b16 %v213, %v211
    %v236 = vpack.c.b16 %v214, %v212
    %v237 = vpack.c.b16 %v217, %v215
    %v238 = vpack.c.b16 %v218, %v216
    %v239 = vpack.c.b16 %v221, %v219
    %v240 = vpack.c.b16 %v222, %v220
    %v241 = vpack.c.b16 %v225, %v223
    %v242 = vpack.c.b16 %v226, %v224
    %259 = vmatpush.bf16.msra.mxu0 %v241
    %260 = vmatpush.bf16.msra.mxu0 %v239
    %261 = vmatpush.bf16.msra.mxu0 %v237
    %262 = vmatpush.bf16.msra.mxu0 %v235
    %263 = vmatpush.bf16.msra.mxu0 %v233
    %264 = vmatpush.bf16.msra.mxu0 %v231
    %265 = vmatpush.bf16.msra.mxu0 %v229
    %266 = vmatpush.bf16.msra.mxu0 %v227
    %267 = vmatmul.bf16.gmra.mxu0 %v177
    %v268 = vpop.f32.mrf.mxu0
    %v269 = vadd.f32 0.0, %v268
    %v270 = vpop.f32.mrf.mxu0
    %v271 = vadd.f32 0.0, %v270
    %272 = vdwg.mxu0
    %273 = vmatpush.bf16.msra.mxu0 %v242
    %274 = vmatpush.bf16.msra.mxu0 %v240
    %275 = vmatpush.bf16.msra.mxu0 %v238
    %276 = vmatpush.bf16.msra.mxu0 %v236
    %277 = vmatpush.bf16.msra.mxu0 %v234
    %278 = vmatpush.bf16.msra.mxu0 %v232
    %279 = vmatpush.bf16.msra.mxu0 %v230
    %280 = vmatpush.bf16.msra.mxu0 %v228
    %281 = vmatmul.bf16.gmra.mxu0 %v177
    %v282 = vpop.f32.mrf.mxu0
    %v283 = vadd.f32 0.0, %v282
    %v284 = vpop.f32.mrf.mxu0
    %v285 = vadd.f32 0.0, %v284
    %286 = vdwg.mxu0
    %v289 = vunpack.c.l.b16 %v31
    %v290 = vunpack.c.l.b16 %v32
    %v291 = vpack.c.b16 %v290, %v289
    %v309 = vunpack.c.l.b16 %v61
    %v310 = vunpack.c.h.b16 %v61
    %v311 = vunpack.c.l.b16 %v62
    %v312 = vunpack.c.h.b16 %v62
    %v313 = vunpack.c.l.b16 %v63
    %v314 = vunpack.c.h.b16 %v63
    %v315 = vunpack.c.l.b16 %v64
    %v316 = vunpack.c.h.b16 %v64
    %v317 = vunpack.c.l.b16 %v65
    %v318 = vunpack.c.h.b16 %v65
    %v319 = vunpack.c.l.b16 %v66
    %v320 = vunpack.c.h.b16 %v66
    %v321 = vunpack.c.l.b16 %v67
    %v322 = vunpack.c.h.b16 %v67
    %v323 = vunpack.c.l.b16 %v68
    %v324 = vunpack.c.h.b16 %v68
    %v325 = vunpack.c.l.b16 %v69
    %v326 = vunpack.c.h.b16 %v69
    %v327 = vunpack.c.l.b16 %v70
    %v328 = vunpack.c.h.b16 %v70
    %v329 = vunpack.c.l.b16 %v71
    %v330 = vunpack.c.h.b16 %v71
    %v331 = vunpack.c.l.b16 %v72
    %v332 = vunpack.c.h.b16 %v72
    %v333 = vunpack.c.l.b16 %v73
    %v334 = vunpack.c.h.b16 %v73
    %v335 = vunpack.c.l.b16 %v74
    %v336 = vunpack.c.h.b16 %v74
    %v337 = vunpack.c.l.b16 %v75
    %v338 = vunpack.c.h.b16 %v75
    %v339 = vunpack.c.l.b16 %v76
    %v340 = vunpack.c.h.b16 %v76
    %v341 = vpack.c.b16 %v311, %v309
    %v342 = vpack.c.b16 %v312, %v310
    %v343 = vpack.c.b16 %v315, %v313
    %v344 = vpack.c.b16 %v316, %v314
    %v345 = vpack.c.b16 %v319, %v317
    %v346 = vpack.c.b16 %v320, %v318
    %v347 = vpack.c.b16 %v323, %v321
    %v348 = vpack.c.b16 %v324, %v322
    %v349 = vpack.c.b16 %v327, %v325
    %v350 = vpack.c.b16 %v328, %v326
    %v351 = vpack.c.b16 %v331, %v329
    %v352 = vpack.c.b16 %v332, %v330
    %v353 = vpack.c.b16 %v335, %v333
    %v354 = vpack.c.b16 %v336, %v334
    %v355 = vpack.c.b16 %v339, %v337
    %v356 = vpack.c.b16 %v340, %v338
    %373 = vmatpush.bf16.msra.mxu0 %v355
    %374 = vmatpush.bf16.msra.mxu0 %v353
    %375 = vmatpush.bf16.msra.mxu0 %v351
    %376 = vmatpush.bf16.msra.mxu0 %v349
    %377 = vmatpush.bf16.msra.mxu0 %v347
    %378 = vmatpush.bf16.msra.mxu0 %v345
    %379 = vmatpush.bf16.msra.mxu0 %v343
    %380 = vmatpush.bf16.msra.mxu0 %v341
    %381 = vmatmul.bf16.gmra.mxu0 %v291
    %v382 = vpop.f32.mrf.mxu0
    %v383 = vadd.f32 0.0, %v382
    %v384 = vpop.f32.mrf.mxu0
    %v385 = vadd.f32 0.0, %v384
    %386 = vdwg.mxu0
    %387 = vmatpush.bf16.msra.mxu0 %v356
    %388 = vmatpush.bf16.msra.mxu0 %v354
    %389 = vmatpush.bf16.msra.mxu0 %v352
    %390 = vmatpush.bf16.msra.mxu0 %v350
    %391 = vmatpush.bf16.msra.mxu0 %v348
    %392 = vmatpush.bf16.msra.mxu0 %v346
    %393 = vmatpush.bf16.msra.mxu0 %v344
    %394 = vmatpush.bf16.msra.mxu0 %v342
    %395 = vmatmul.bf16.gmra.mxu0 %v291
    %v396 = vpop.f32.mrf.mxu0
    %v397 = vadd.f32 0.0, %v396
    %v398 = vpop.f32.mrf.mxu0
    %v399 = vadd.f32 0.0, %v398
    %400 = vdwg.mxu0
    %v403 = vunpack.c.l.b16 %v33
    %v404 = vunpack.c.l.b16 %v34
    %v405 = vpack.c.b16 %v404, %v403
    %v423 = vunpack.c.l.b16 %v77
    %v424 = vunpack.c.h.b16 %v77
    %v425 = vunpack.c.l.b16 %v78
    %v426 = vunpack.c.h.b16 %v78
    %v427 = vunpack.c.l.b16 %v79
    %v428 = vunpack.c.h.b16 %v79
    %v429 = vunpack.c.l.b16 %v80
    %v430 = vunpack.c.h.b16 %v80
    %v431 = vunpack.c.l.b16 %v81
    %v432 = vunpack.c.h.b16 %v81
    %v433 = vunpack.c.l.b16 %v82
    %v434 = vunpack.c.h.b16 %v82
    %v435 = vunpack.c.l.b16 %v83
    %v436 = vunpack.c.h.b16 %v83
    %v437 = vunpack.c.l.b16 %v84
    %v438 = vunpack.c.h.b16 %v84
    %v439 = vunpack.c.l.b16 %v85
    %v440 = vunpack.c.h.b16 %v85
    %v441 = vunpack.c.l.b16 %v86
    %v442 = vunpack.c.h.b16 %v86
    %v443 = vunpack.c.l.b16 %v87
    %v444 = vunpack.c.h.b16 %v87
    %v445 = vunpack.c.l.b16 %v88
    %v446 = vunpack.c.h.b16 %v88
    %v447 = vunpack.c.l.b16 %v89
    %v448 = vunpack.c.h.b16 %v89
    %v449 = vunpack.c.l.b16 %v90
    %v450 = vunpack.c.h.b16 %v90
    %v451 = vunpack.c.l.b16 %v91
    %v452 = vunpack.c.h.b16 %v91
    %v453 = vunpack.c.l.b16 %v92
    %v454 = vunpack.c.h.b16 %v92
    %v455 = vpack.c.b16 %v425, %v423
    %v456 = vpack.c.b16 %v426, %v424
    %v457 = vpack.c.b16 %v429, %v427
    %v458 = vpack.c.b16 %v430, %v428
    %v459 = vpack.c.b16 %v433, %v431
    %v460 = vpack.c.b16 %v434, %v432
    %v461 = vpack.c.b16 %v437, %v435
    %v462 = vpack.c.b16 %v438, %v436
    %v463 = vpack.c.b16 %v441, %v439
    %v464 = vpack.c.b16 %v442, %v440
    %v465 = vpack.c.b16 %v445, %v443
    %v466 = vpack.c.b16 %v446, %v444
    %v467 = vpack.c.b16 %v449, %v447
    %v468 = vpack.c.b16 %v450, %v448
    %v469 = vpack.c.b16 %v453, %v451
    %v470 = vpack.c.b16 %v454, %v452
    %487 = vmatpush.bf16.msra.mxu0 %v469
    %488 = vmatpush.bf16.msra.mxu0 %v467
    %489 = vmatpush.bf16.msra.mxu0 %v465
    %490 = vmatpush.bf16.msra.mxu0 %v463
    %491 = vmatpush.bf16.msra.mxu0 %v461
    %492 = vmatpush.bf16.msra.mxu0 %v459
    %493 = vmatpush.bf16.msra.mxu0 %v457
    %494 = vmatpush.bf16.msra.mxu0 %v455
    %495 = vmatmul.bf16.gmra.mxu0 %v405
    %v496 = vpop.f32.mrf.mxu0
    %v497 = vadd.f32 0.0, %v496
    %v498 = vpop.f32.mrf.mxu0
    %v499 = vadd.f32 0.0, %v498
    %500 = vdwg.mxu0
    %501 = vmatpush.bf16.msra.mxu0 %v470
    %502 = vmatpush.bf16.msra.mxu0 %v468
    %503 = vmatpush.bf16.msra.mxu0 %v466
    %504 = vmatpush.bf16.msra.mxu0 %v464
    %505 = vmatpush.bf16.msra.mxu0 %v462
    %506 = vmatpush.bf16.msra.mxu0 %v460
    %507 = vmatpush.bf16.msra.mxu0 %v458
    %508 = vmatpush.bf16.msra.mxu0 %v456
    %509 = vmatmul.bf16.gmra.mxu0 %v405
    %v510 = vpop.f32.mrf.mxu0
    %v511 = vadd.f32 0.0, %v510
    %v512 = vpop.f32.mrf.mxu0
    %v513 = vadd.f32 0.0, %v512
    %514 = vdwg.mxu0
    %v517 = vunpack.c.l.b16 %v35
    %v518 = vunpack.c.l.b16 %v36
    %v519 = vpack.c.b16 %v518, %v517
    %v537 = vunpack.c.l.b16 %v93
    %v538 = vunpack.c.h.b16 %v93
    %v539 = vunpack.c.l.b16 %v94
    %v540 = vunpack.c.h.b16 %v94
    %v541 = vunpack.c.l.b16 %v95
    %v542 = vunpack.c.h.b16 %v95
    %v543 = vunpack.c.l.b16 %v96
    %v544 = vunpack.c.h.b16 %v96
    %v545 = vunpack.c.l.b16 %v97
    %v546 = vunpack.c.h.b16 %v97
    %v547 = vunpack.c.l.b16 %v98
    %v548 = vunpack.c.h.b16 %v98
    %v549 = vunpack.c.l.b16 %v99
    %v550 = vunpack.c.h.b16 %v99
    %v551 = vunpack.c.l.b16 %v100
    %v552 = vunpack.c.h.b16 %v100
    %v553 = vunpack.c.l.b16 %v101
    %v554 = vunpack.c.h.b16 %v101
    %v555 = vunpack.c.l.b16 %v102
    %v556 = vunpack.c.h.b16 %v102
    %v557 = vunpack.c.l.b16 %v103
    %v558 = vunpack.c.h.b16 %v103
    %v559 = vunpack.c.l.b16 %v104
    %v560 = vunpack.c.h.b16 %v104
    %v561 = vunpack.c.l.b16 %v105
    %v562 = vunpack.c.h.b16 %v105
    %v563 = vunpack.c.l.b16 %v106
    %v564 = vunpack.c.h.b16 %v106
    %v565 = vunpack.c.l.b16 %v107
    %v566 = vunpack.c.h.b16 %v107
    %v567 = vunpack.c.l.b16 %v108
    %v568 = vunpack.c.h.b16 %v108
    %v569 = vpack.c.b16 %v539, %v537
    %v570 = vpack.c.b16 %v540, %v538
    %v571 = vpack.c.b16 %v543, %v541
    %v572 = vpack.c.b16 %v544, %v542
    %v573 = vpack.c.b16 %v547, %v545
    %v574 = vpack.c.b16 %v548, %v546
    %v575 = vpack.c.b16 %v551, %v549
    %v576 = vpack.c.b16 %v552, %v550
    %v577 = vpack.c.b16 %v555, %v553
    %v578 = vpack.c.b16 %v556, %v554
    %v579 = vpack.c.b16 %v559, %v557
    %v580 = vpack.c.b16 %v560, %v558
    %v581 = vpack.c.b16 %v563, %v561
    %v582 = vpack.c.b16 %v564, %v562
    %v583 = vpack.c.b16 %v567, %v565
    %v584 = vpack.c.b16 %v568, %v566
    %601 = vmatpush.bf16.msra.mxu0 %v583
    %602 = vmatpush.bf16.msra.mxu0 %v581
    %603 = vmatpush.bf16.msra.mxu0 %v579
    %604 = vmatpush.bf16.msra.mxu0 %v577
    %605 = vmatpush.bf16.msra.mxu0 %v575
    %606 = vmatpush.bf16.msra.mxu0 %v573
    %607 = vmatpush.bf16.msra.mxu0 %v571
    %608 = vmatpush.bf16.msra.mxu0 %v569
    %609 = vmatmul.bf16.gmra.mxu0 %v519
    %v610 = vpop.f32.mrf.mxu0
    %v611 = vadd.f32 0.0, %v610
    %v612 = vpop.f32.mrf.mxu0
    %v613 = vadd.f32 0.0, %v612
    %614 = vdwg.mxu0
    %615 = vmatpush.bf16.msra.mxu0 %v584
    %616 = vmatpush.bf16.msra.mxu0 %v582
    %617 = vmatpush.bf16.msra.mxu0 %v580
    %618 = vmatpush.bf16.msra.mxu0 %v578
    %619 = vmatpush.bf16.msra.mxu0 %v576
    %620 = vmatpush.bf16.msra.mxu0 %v574
    %621 = vmatpush.bf16.msra.mxu0 %v572
    %622 = vmatpush.bf16.msra.mxu0 %v570
    %623 = vmatmul.bf16.gmra.mxu0 %v519
    %v624 = vpop.f32.mrf.mxu0
    %v625 = vadd.f32 0.0, %v624
    %v626 = vpop.f32.mrf.mxu0
    %v627 = vadd.f32 0.0, %v626
    %628 = vdwg.mxu0
    %v631 = vunpack.c.l.b16 %v37
    %v632 = vunpack.c.l.b16 %v38
    %v633 = vpack.c.b16 %v632, %v631
    %v651 = vunpack.c.l.b16 %v109
    %v652 = vunpack.c.h.b16 %v109
    %v653 = vunpack.c.l.b16 %v110
    %v654 = vunpack.c.h.b16 %v110
    %v655 = vunpack.c.l.b16 %v111
    %v656 = vunpack.c.h.b16 %v111
    %v657 = vunpack.c.l.b16 %v112
    %v658 = vunpack.c.h.b16 %v112
    %v659 = vunpack.c.l.b16 %v113
    %v660 = vunpack.c.h.b16 %v113
    %v661 = vunpack.c.l.b16 %v114
    %v662 = vunpack.c.h.b16 %v114
    %v663 = vunpack.c.l.b16 %v115
    %v664 = vunpack.c.h.b16 %v115
    %v665 = vunpack.c.l.b16 %v116
    %v666 = vunpack.c.h.b16 %v116
    %v667 = vunpack.c.l.b16 %v117
    %v668 = vunpack.c.h.b16 %v117
    %v669 = vunpack.c.l.b16 %v118
    %v670 = vunpack.c.h.b16 %v118
    %v671 = vunpack.c.l.b16 %v119
    %v672 = vunpack.c.h.b16 %v119
    %v673 = vunpack.c.l.b16 %v120
    %v674 = vunpack.c.h.b16 %v120
    %v675 = vunpack.c.l.b16 %v121
    %v676 = vunpack.c.h.b16 %v121
    %v677 = vunpack.c.l.b16 %v122
    %v678 = vunpack.c.h.b16 %v122
    %v679 = vunpack.c.l.b16 %v123
    %v680 = vunpack.c.h.b16 %v123
    %v681 = vunpack.c.l.b16 %v124
    %v682 = vunpack.c.h.b16 %v124
    %v683 = vpack.c.b16 %v653, %v651
    %v684 = vpack.c.b16 %v654, %v652
    %v685 = vpack.c.b16 %v657, %v655
    %v686 = vpack.c.b16 %v658, %v656
    %v687 = vpack.c.b16 %v661, %v659
    %v688 = vpack.c.b16 %v662, %v660
    %v689 = vpack.c.b16 %v665, %v663
    %v690 = vpack.c.b16 %v666, %v664
    %v691 = vpack.c.b16 %v669, %v667
    %v692 = vpack.c.b16 %v670, %v668
    %v693 = vpack.c.b16 %v673, %v671
    %v694 = vpack.c.b16 %v674, %v672
    %v695 = vpack.c.b16 %v677, %v675
    %v696 = vpack.c.b16 %v678, %v676
    %v697 = vpack.c.b16 %v681, %v679
    %v698 = vpack.c.b16 %v682, %v680
    %715 = vmatpush.bf16.msra.mxu0 %v697
    %716 = vmatpush.bf16.msra.mxu0 %v695
    %717 = vmatpush.bf16.msra.mxu0 %v693
    %718 = vmatpush.bf16.msra.mxu0 %v691
    %719 = vmatpush.bf16.msra.mxu0 %v689
    %720 = vmatpush.bf16.msra.mxu0 %v687
    %721 = vmatpush.bf16.msra.mxu0 %v685
    %722 = vmatpush.bf16.msra.mxu0 %v683
    %723 = vmatmul.bf16.gmra.mxu0 %v633
    %v724 = vpop.f32.mrf.mxu0
    %v725 = vadd.f32 0.0, %v724
    %v726 = vpop.f32.mrf.mxu0
    %v727 = vadd.f32 0.0, %v726
    %728 = vdwg.mxu0
    %729 = vmatpush.bf16.msra.mxu0 %v698
    %730 = vmatpush.bf16.msra.mxu0 %v696
    %731 = vmatpush.bf16.msra.mxu0 %v694
    %732 = vmatpush.bf16.msra.mxu0 %v692
    %733 = vmatpush.bf16.msra.mxu0 %v690
    %734 = vmatpush.bf16.msra.mxu0 %v688
    %735 = vmatpush.bf16.msra.mxu0 %v686
    %736 = vmatpush.bf16.msra.mxu0 %v684
    %737 = vmatmul.bf16.gmra.mxu0 %v633
    %v738 = vpop.f32.mrf.mxu0
    %v739 = vadd.f32 0.0, %v738
    %v740 = vpop.f32.mrf.mxu0
    %v741 = vadd.f32 0.0, %v740
    %742 = vdwg.mxu0
    %v745 = vunpack.c.l.b16 %v39
    %v746 = vunpack.c.l.b16 %v40
    %v747 = vpack.c.b16 %v746, %v745
    %v765 = vunpack.c.l.b16 %v125
    %v766 = vunpack.c.h.b16 %v125
    %v767 = vunpack.c.l.b16 %v126
    %v768 = vunpack.c.h.b16 %v126
    %v769 = vunpack.c.l.b16 %v127
    %v770 = vunpack.c.h.b16 %v127
    %v771 = vunpack.c.l.b16 %v128
    %v772 = vunpack.c.h.b16 %v128
    %v773 = vunpack.c.l.b16 %v129
    %v774 = vunpack.c.h.b16 %v129
    %v775 = vunpack.c.l.b16 %v130
    %v776 = vunpack.c.h.b16 %v130
    %v777 = vunpack.c.l.b16 %v131
    %v778 = vunpack.c.h.b16 %v131
    %v779 = vunpack.c.l.b16 %v132
    %v780 = vunpack.c.h.b16 %v132
    %v781 = vunpack.c.l.b16 %v133
    %v782 = vunpack.c.h.b16 %v133
    %v783 = vunpack.c.l.b16 %v134
    %v784 = vunpack.c.h.b16 %v134
    %v785 = vunpack.c.l.b16 %v135
    %v786 = vunpack.c.h.b16 %v135
    %v787 = vunpack.c.l.b16 %v136
    %v788 = vunpack.c.h.b16 %v136
    %v789 = vunpack.c.l.b16 %v137
    %v790 = vunpack.c.h.b16 %v137
    %v791 = vunpack.c.l.b16 %v138
    %v792 = vunpack.c.h.b16 %v138
    %v793 = vunpack.c.l.b16 %v139
    %v794 = vunpack.c.h.b16 %v139
    %v795 = vunpack.c.l.b16 %v140
    %v796 = vunpack.c.h.b16 %v140
    %v797 = vpack.c.b16 %v767, %v765
    %v798 = vpack.c.b16 %v768, %v766
    %v799 = vpack.c.b16 %v771, %v769
    %v800 = vpack.c.b16 %v772, %v770
    %v801 = vpack.c.b16 %v775, %v773
    %v802 = vpack.c.b16 %v776, %v774
    %v803 = vpack.c.b16 %v779, %v777
    %v804 = vpack.c.b16 %v780, %v778
    %v805 = vpack.c.b16 %v783, %v781
    %v806 = vpack.c.b16 %v784, %v782
    %v807 = vpack.c.b16 %v787, %v785
    %v808 = vpack.c.b16 %v788, %v786
    %v809 = vpack.c.b16 %v791, %v789
    %v810 = vpack.c.b16 %v792, %v790
    %v811 = vpack.c.b16 %v795, %v793
    %v812 = vpack.c.b16 %v796, %v794
    %829 = vmatpush.bf16.msra.mxu0 %v811
    %830 = vmatpush.bf16.msra.mxu0 %v809
    %831 = vmatpush.bf16.msra.mxu0 %v807
    %832 = vmatpush.bf16.msra.mxu0 %v805
    %833 = vmatpush.bf16.msra.mxu0 %v803
    %834 = vmatpush.bf16.msra.mxu0 %v801
    %835 = vmatpush.bf16.msra.mxu0 %v799
    %836 = vmatpush.bf16.msra.mxu0 %v797
    %837 = vmatmul.bf16.gmra.mxu0 %v747
    %v838 = vpop.f32.mrf.mxu0
    %v839 = vadd.f32 0.0, %v838
    %v840 = vpop.f32.mrf.mxu0
    %v841 = vadd.f32 0.0, %v840
    %842 = vdwg.mxu0
    %843 = vmatpush.bf16.msra.mxu0 %v812
    %844 = vmatpush.bf16.msra.mxu0 %v810
    %845 = vmatpush.bf16.msra.mxu0 %v808
    %846 = vmatpush.bf16.msra.mxu0 %v806
    %847 = vmatpush.bf16.msra.mxu0 %v804
    %848 = vmatpush.bf16.msra.mxu0 %v802
    %849 = vmatpush.bf16.msra.mxu0 %v800
    %850 = vmatpush.bf16.msra.mxu0 %v798
    %851 = vmatmul.bf16.gmra.mxu0 %v747
    %v852 = vpop.f32.mrf.mxu0
    %v853 = vadd.f32 0.0, %v852
    %v854 = vpop.f32.mrf.mxu0
    %v855 = vadd.f32 0.0, %v854
    %856 = vdwg.mxu0
    %v859 = vunpack.c.l.b16 %v41
    %v860 = vunpack.c.l.b16 %v42
    %v861 = vpack.c.b16 %v860, %v859
    %v879 = vunpack.c.l.b16 %v141
    %v880 = vunpack.c.h.b16 %v141
    %v881 = vunpack.c.l.b16 %v142
    %v882 = vunpack.c.h.b16 %v142
    %v883 = vunpack.c.l.b16 %v143
    %v884 = vunpack.c.h.b16 %v143
    %v885 = vunpack.c.l.b16 %v144
    %v886 = vunpack.c.h.b16 %v144
    %v887 = vunpack.c.l.b16 %v145
    %v888 = vunpack.c.h.b16 %v145
    %v889 = vunpack.c.l.b16 %v146
    %v890 = vunpack.c.h.b16 %v146
    %v891 = vunpack.c.l.b16 %v147
    %v892 = vunpack.c.h.b16 %v147
    %v893 = vunpack.c.l.b16 %v148
    %v894 = vunpack.c.h.b16 %v148
    %v895 = vunpack.c.l.b16 %v149
    %v896 = vunpack.c.h.b16 %v149
    %v897 = vunpack.c.l.b16 %v150
    %v898 = vunpack.c.h.b16 %v150
    %v899 = vunpack.c.l.b16 %v151
    %v900 = vunpack.c.h.b16 %v151
    %v901 = vunpack.c.l.b16 %v152
    %v902 = vunpack.c.h.b16 %v152
    %v903 = vunpack.c.l.b16 %v153
    %v904 = vunpack.c.h.b16 %v153
    %v905 = vunpack.c.l.b16 %v154
    %v906 = vunpack.c.h.b16 %v154
    %v907 = vunpack.c.l.b16 %v155
    %v908 = vunpack.c.h.b16 %v155
    %v909 = vunpack.c.l.b16 %v156
    %v910 = vunpack.c.h.b16 %v156
    %v911 = vpack.c.b16 %v881, %v879
    %v912 = vpack.c.b16 %v882, %v880
    %v913 = vpack.c.b16 %v885, %v883
    %v914 = vpack.c.b16 %v886, %v884
    %v915 = vpack.c.b16 %v889, %v887
    %v916 = vpack.c.b16 %v890, %v888
    %v917 = vpack.c.b16 %v893, %v891
    %v918 = vpack.c.b16 %v894, %v892
    %v919 = vpack.c.b16 %v897, %v895
    %v920 = vpack.c.b16 %v898, %v896
    %v921 = vpack.c.b16 %v901, %v899
    %v922 = vpack.c.b16 %v902, %v900
    %v923 = vpack.c.b16 %v905, %v903
    %v924 = vpack.c.b16 %v906, %v904
    %v925 = vpack.c.b16 %v909, %v907
    %v926 = vpack.c.b16 %v910, %v908
    %943 = vmatpush.bf16.msra.mxu0 %v925
    %944 = vmatpush.bf16.msra.mxu0 %v923
    %945 = vmatpush.bf16.msra.mxu0 %v921
    %946 = vmatpush.bf16.msra.mxu0 %v919
    %947 = vmatpush.bf16.msra.mxu0 %v917
    %948 = vmatpush.bf16.msra.mxu0 %v915
    %949 = vmatpush.bf16.msra.mxu0 %v913
    %950 = vmatpush.bf16.msra.mxu0 %v911
    %951 = vmatmul.bf16.gmra.mxu0 %v861
    %v952 = vpop.f32.mrf.mxu0
    %v953 = vadd.f32 0.0, %v952
    %v954 = vpop.f32.mrf.mxu0
    %v955 = vadd.f32 0.0, %v954
    %956 = vdwg.mxu0
    %957 = vmatpush.bf16.msra.mxu0 %v926
    %958 = vmatpush.bf16.msra.mxu0 %v924
    %959 = vmatpush.bf16.msra.mxu0 %v922
    %960 = vmatpush.bf16.msra.mxu0 %v920
    %961 = vmatpush.bf16.msra.mxu0 %v918
    %962 = vmatpush.bf16.msra.mxu0 %v916
    %963 = vmatpush.bf16.msra.mxu0 %v914
    %964 = vmatpush.bf16.msra.mxu0 %v912
    %965 = vmatmul.bf16.gmra.mxu0 %v861
    %v966 = vpop.f32.mrf.mxu0
    %v967 = vadd.f32 0.0, %v966
    %v968 = vpop.f32.mrf.mxu0
    %v969 = vadd.f32 0.0, %v968
    %970 = vdwg.mxu0
    %v973 = vunpack.c.l.b16 %v43
    %v974 = vunpack.c.l.b16 %v44
    %v975 = vpack.c.b16 %v974, %v973
    %v993 = vunpack.c.l.b16 %v157
    %v994 = vunpack.c.h.b16 %v157
    %v995 = vunpack.c.l.b16 %v158
    %v996 = vunpack.c.h.b16 %v158
    %v997 = vunpack.c.l.b16 %v159
    %v998 = vunpack.c.h.b16 %v159
    %v999 = vunpack.c.l.b16 %v160
    %v1000 = vunpack.c.h.b16 %v160
    %v1001 = vunpack.c.l.b16 %v161
    %v1002 = vunpack.c.h.b16 %v161
    %v1003 = vunpack.c.l.b16 %v162
    %v1004 = vunpack.c.h.b16 %v162
    %v1005 = vunpack.c.l.b16 %v163
    %v1006 = vunpack.c.h.b16 %v163
    %v1007 = vunpack.c.l.b16 %v164
    %v1008 = vunpack.c.h.b16 %v164
    %v1009 = vunpack.c.l.b16 %v165
    %v1010 = vunpack.c.h.b16 %v165
    %v1011 = vunpack.c.l.b16 %v166
    %v1012 = vunpack.c.h.b16 %v166
    %v1013 = vunpack.c.l.b16 %v167
    %v1014 = vunpack.c.h.b16 %v167
    %v1015 = vunpack.c.l.b16 %v168
    %v1016 = vunpack.c.h.b16 %v168
    %v1017 = vunpack.c.l.b16 %v169
    %v1018 = vunpack.c.h.b16 %v169
    %v1019 = vunpack.c.l.b16 %v170
    %v1020 = vunpack.c.h.b16 %v170
    %v1021 = vunpack.c.l.b16 %v171
    %v1022 = vunpack.c.h.b16 %v171
    %v1023 = vunpack.c.l.b16 %v172
    %v1024 = vunpack.c.h.b16 %v172
    %v1025 = vpack.c.b16 %v995, %v993
    %v1026 = vpack.c.b16 %v996, %v994
    %v1027 = vpack.c.b16 %v999, %v997
    %v1028 = vpack.c.b16 %v1000, %v998
    %v1029 = vpack.c.b16 %v1003, %v1001
    %v1030 = vpack.c.b16 %v1004, %v1002
    %v1031 = vpack.c.b16 %v1007, %v1005
    %v1032 = vpack.c.b16 %v1008, %v1006
    %v1033 = vpack.c.b16 %v1011, %v1009
    %v1034 = vpack.c.b16 %v1012, %v1010
    %v1035 = vpack.c.b16 %v1015, %v1013
    %v1036 = vpack.c.b16 %v1016, %v1014
    %v1037 = vpack.c.b16 %v1019, %v1017
    %v1038 = vpack.c.b16 %v1020, %v1018
    %v1039 = vpack.c.b16 %v1023, %v1021
    %v1040 = vpack.c.b16 %v1024, %v1022
    %1057 = vmatpush.bf16.msra.mxu0 %v1039
    %1058 = vmatpush.bf16.msra.mxu0 %v1037
    %1059 = vmatpush.bf16.msra.mxu0 %v1035
    %1060 = vmatpush.bf16.msra.mxu0 %v1033
    %1061 = vmatpush.bf16.msra.mxu0 %v1031
    %1062 = vmatpush.bf16.msra.mxu0 %v1029
    %1063 = vmatpush.bf16.msra.mxu0 %v1027
    %1064 = vmatpush.bf16.msra.mxu0 %v1025
    %1065 = vmatmul.bf16.gmra.mxu0 %v975
    %v1066 = vpop.f32.mrf.mxu0
    %v1067 = vadd.f32 0.0, %v1066
    %v1068 = vpop.f32.mrf.mxu0
    %v1069 = vadd.f32 0.0, %v1068
    %1070 = vdwg.mxu0
    %1071 = vmatpush.bf16.msra.mxu0 %v1040
    %1072 = vmatpush.bf16.msra.mxu0 %v1038
    %1073 = vmatpush.bf16.msra.mxu0 %v1036
    %1074 = vmatpush.bf16.msra.mxu0 %v1034
    %1075 = vmatpush.bf16.msra.mxu0 %v1032
    %1076 = vmatpush.bf16.msra.mxu0 %v1030
    %1077 = vmatpush.bf16.msra.mxu0 %v1028
    %1078 = vmatpush.bf16.msra.mxu0 %v1026
    %1079 = vmatmul.bf16.gmra.mxu0 %v975
    %v1080 = vpop.f32.mrf.mxu0
    %v1081 = vadd.f32 0.0, %v1080
    %v1082 = vpop.f32.mrf.mxu0
    %v1083 = vadd.f32 0.0, %v1082
    %1084 = vdwg.mxu0
    %1085 = vst [vmem:[%s2] sm:$0xff] %v269
    %1086 = vst [vmem:[%s2 + $0x8] sm:$0xff] %v271
    %1087 = vst [vmem:[%s2 + $0x10] sm:$0xff] %v383
    %1088 = vst [vmem:[%s2 + $0x18] sm:$0xff] %v385
    %1089 = vst [vmem:[%s2 + $0x20] sm:$0xff] %v497
    %1090 = vst [vmem:[%s2 + $0x28] sm:$0xff] %v499
    %1091 = vst [vmem:[%s2 + $0x30] sm:$0xff] %v611
    %1092 = vst [vmem:[%s2 + $0x38] sm:$0xff] %v613
    %1093 = vst [vmem:[%s2 + $0x40] sm:$0xff] %v725
    %1094 = vst [vmem:[%s2 + $0x48] sm:$0xff] %v727
    %1095 = vst [vmem:[%s2 + $0x50] sm:$0xff] %v839
    %1096 = vst [vmem:[%s2 + $0x58] sm:$0xff] %v841
    %1097 = vst [vmem:[%s2 + $0x60] sm:$0xff] %v953
    %1098 = vst [vmem:[%s2 + $0x68] sm:$0xff] %v955
    %1099 = vst [vmem:[%s2 + $0x70] sm:$0xff] %v1067
    %1100 = vst [vmem:[%s2 + $0x78] sm:$0xff] %v1069
    %1101 = vst [vmem:[%s3] sm:$0xff] %v283
    %1102 = vst [vmem:[%s3 + $0x8] sm:$0xff] %v285
    %1103 = vst [vmem:[%s3 + $0x10] sm:$0xff] %v397
    %1104 = vst [vmem:[%s3 + $0x18] sm:$0xff] %v399
    %1105 = vst [vmem:[%s3 + $0x20] sm:$0xff] %v511
    %1106 = vst [vmem:[%s3 + $0x28] sm:$0xff] %v513
    %1107 = vst [vmem:[%s3 + $0x30] sm:$0xff] %v625
    %1108 = vst [vmem:[%s3 + $0x38] sm:$0xff] %v627
    %1109 = vst [vmem:[%s3 + $0x40] sm:$0xff] %v739
    %1110 = vst [vmem:[%s3 + $0x48] sm:$0xff] %v741
    %1111 = vst [vmem:[%s3 + $0x50] sm:$0xff] %v853
    %1112 = vst [vmem:[%s3 + $0x58] sm:$0xff] %v855
    %1113 = vst [vmem:[%s3 + $0x60] sm:$0xff] %v967
    %1114 = vst [vmem:[%s3 + $0x68] sm:$0xff] %v969
    %1115 = vst [vmem:[%s3 + $0x70] sm:$0xff] %v1081
    %1116 = vst [vmem:[%s3 + $0x78] sm:$0xff] %v1083
    // Predicated region
    $region14: #{_spectral_forward.1} parent=1 // pred_check
      _
    $region15: #{_spectral_forward.1} parent=1 // pred_check_branch
      %1118 = sbr.rel (0) target = $region17
    $region16: #{_spectral_forward.1} parent=1 // pred_region
      _
    $region17: #{_spectral_forward.1} parent=1 // pred_fallthru
      _
    // Predicated region
    $region18: #{_spectral_forward.1} parent=1 // pred_check
      _
    $region19: #{_spectral_forward.1} parent=1 // pred_check_branch
      %1120 = sbr.rel (0) target = $region21
    $region20: #{_spectral_forward.1} parent=1 // pred_region
      _
    $region21: #{_spectral_forward.1} parent=1 // pred_fallthru
      _
    // Predicated region
    $region22: #{_spectral_forward.1} parent=1 // pred_check
      _
    $region23: #{_spectral_forward.1} parent=1 // pred_check_branch
      %1122 = sbr.rel (0) target = $region25
    $region24: #{_spectral_forward.1} parent=1 // pred_region
      _
    $region25: #{_spectral_forward.1} parent=1 // pred_fallthru
      _
    // Predicated region
    $region26: #{_spectral_forward.1} parent=1 // pred_check
      _
    $region27: #{_spectral_forward.1} parent=1 // pred_check_branch
      %1124 = sbr.rel (0) target = $region29
    $region28: #{_spectral_forward.1} parent=1 // pred_region
      _
    $region29: #{_spectral_forward.1} parent=1 // pred_fallthru
      _
    %1125 = vsyncpa [#allocation3], 1

</llo_original>
